<compile_context>
chip_gen: v7x
topology: tpu7x:2x2x1
jax: 0.10.0
libtpu: 0.0.40
codegen_flags: <defaults>
</compile_context>

<pallas_src>
import functools

import jax
import jax.numpy as jnp
from jax import lax
from jax.experimental import pallas as pl
from jax.experimental.pallas import tpu as pltpu


# ---------------------------------------------------------------------------
# VMEM limit: generation-aware (~80 MiB on 128 MiB parts, ~40 MiB on v7x).
# ---------------------------------------------------------------------------
def _vmem_limit_bytes(est_bytes):
    cap = 64 * 1024 * 1024
    try:
        info = pltpu.get_tpu_info()
        cap = int(getattr(info, "vmem_capacity_bytes", cap))
    except Exception:
        pass
    ceiling = max(cap * 5 // 8, 32 * 1024 * 1024)
    return int(min(max(2 * est_bytes, 16 * 1024 * 1024), ceiling))


# ---------------------------------------------------------------------------
# Fused attention kernel: one batch element per grid step, all heads in-kernel.
#   x_ref    : (N, dim)        activations for this batch element
#   wqvk_ref : (3*inner, dim)  PyTorch-layout fused projection (q rows pre-scaled)
#   wout_ref : (dim, inner)    to_out weight (PyTorch layout)
#   bout_ref : (1, dim)        to_out bias
#   o_ref    : (N, dim)        output block
# PyTorch chunk order of this module is (q, v, k) along the fused axis.
# ---------------------------------------------------------------------------
def _attention_fused_kernel(x_ref, wqvk_ref, wout_ref, bout_ref, o_ref, *,
                            heads, dim_head, compute_dtype):
    inner = heads * dim_head

    x = x_ref[...].astype(compute_dtype)            # (N, dim)
    wqvk = wqvk_ref[...].astype(compute_dtype)      # (3*inner, dim)

    # qvk = x @ w_qvk^T  -- trans-B dot_general so the MXU eats the PyTorch
    # weight layout directly (no in-kernel transpose).
    qvk = lax.dot_general(
        x, wqvk, dimension_numbers=(((1,), (1,)), ((), ())),
        preferred_element_type=jnp.float32,
    ).astype(compute_dtype)                          # (N, 3*inner)

    # Full-inner-wide lane slabs; per-head slices below are in-register.
    q_all = qvk[:, 0 * inner:1 * inner]
    v_all = qvk[:, 1 * inner:2 * inner]
    k_all = qvk[:, 2 * inner:3 * inner]

    outs = []
    # TODO(synk): switch to a fori_loop / flash loop once heads grows large.
    for h in range(heads):
        sl = slice(h * dim_head, (h + 1) * dim_head)
        q, v, k = q_all[:, sl], v_all[:, sl], k_all[:, sl]

        # softmax scale already folded into the q rows of w_qvk (f32, outside).
        dots = lax.dot_general(
            q, k, dimension_numbers=(((1,), (1,)), ((), ())),
            preferred_element_type=jnp.float32,
        )                                            # (N, N) f32

        # Max-stabilized softmax in f32; divide moved to the EUP.
        m = jnp.max(dots, axis=-1, keepdims=True)
        e = jnp.exp(dots - m)
        denom = jnp.sum(e, axis=-1, keepdims=True)
        attn = (e * pl.reciprocal(denom, approx=True)).astype(compute_dtype)

        outs.append(jnp.dot(attn, v, preferred_element_type=jnp.float32))

    # Lane-dense head merge: one wide value, one full-width output write.
    out_full = jnp.concatenate(outs, axis=-1).astype(compute_dtype)   # (N, inner)

    # Fused to_out: y = out @ w_out^T + b_out, written directly as (N, dim).
    wout = wout_ref[...].astype(compute_dtype)       # (dim, inner)
    y = lax.dot_general(
        out_full, wout, dimension_numbers=(((1,), (1,)), ((), ())),
        preferred_element_type=jnp.float32,
    ) + bout_ref[...].astype(jnp.float32)            # (N, dim) f32

    o_ref[...] = y.astype(o_ref.dtype)


# ---------------------------------------------------------------------------
# Forward pass of `Attention` (ext_attn=False, dropout=0, project_out=True).
# ---------------------------------------------------------------------------
def attention_forward(x, params, *, heads, dim_head, compute_dtype=jnp.bfloat16):
    B, N, dim = x.shape
    inner = heads * dim_head
    scale = dim_head ** (-0.5)

    w_qvk = params["w_qvk"]                          # (3*inner, dim)
    w_out = params["w_out"]                          # (dim, inner)
    b_out = params["b_out"].reshape(1, dim)          # (1, dim)

    # Fold the softmax scale into the q rows of the fused projection (f32).
    w_qvk = w_qvk.at[:inner].multiply(scale)

    x_spec = pl.BlockSpec((None, N, dim), lambda b: (b, 0, 0))
    wqvk_spec = pl.BlockSpec((3 * inner, dim), lambda b: (0, 0))
    wout_spec = pl.BlockSpec((dim, inner), lambda b: (0, 0))
    bout_spec = pl.BlockSpec((1, dim), lambda b: (0, 0))
    o_spec = pl.BlockSpec((None, N, dim), lambda b: (b, 0, 0))

    f32 = 4
    est = (2 * 2 * N * dim * f32                                    # x / out blocks (double-buffered)
           + 2 * (3 * inner * dim + dim * inner + dim) * f32        # weights + bias
           + 3 * N * 3 * inner * f32                                # qvk (acc + compute-dtype copy)
           + 4 * N * N * f32                                        # logits / exp live ranges
           + 2 * N * inner * f32)                                   # merged head output
    cparams = pltpu.CompilerParams(
        dimension_semantics=("parallel",),
        vmem_limit_bytes=_vmem_limit_bytes(est),
    )

    kernel = functools.partial(
        _attention_fused_kernel,
        heads=heads, dim_head=dim_head, compute_dtype=compute_dtype)

    return pl.pallas_call(
        kernel,
        out_shape=jax.ShapeDtypeStruct((B, N, dim), x.dtype),
        grid_spec=pltpu.PrefetchScalarGridSpec(
            num_scalar_prefetch=0,
            grid=(B,),
            in_specs=[x_spec, wqvk_spec, wout_spec, bout_spec],
            out_specs=o_spec,
        ),
        compiler_params=cparams,
    )(x, w_qvk, w_out, b_out)


# ---------------------------------------------------------------------------
# Pure-JAX reference (module semantics; chunk order q, v, k as in the spec).
# ---------------------------------------------------------------------------
def attention_ref(x, params, *, heads, dim_head):
    B, N, dim = x.shape
    inner_dim = heads * dim_head
    scale = dim_head ** (-0.5)
    qvk = x @ params["w_qvk"].T
    q2d, v2d, k2d = jnp.split(qvk, 3, axis=-1)
    sh = lambda t: t.reshape(B, N, heads, dim_head).transpose(0, 2, 1, 3)
    q, v, k = sh(q2d), sh(v2d), sh(k2d)
    dots = jnp.einsum("bhnd,bhmd->bhnm", q, k) * scale
    attn = jax.nn.softmax(dots, axis=-1)
    out = jnp.einsum("bhnm,bhmd->bhnd", attn, v)
    out = out.transpose(0, 2, 1, 3).reshape(B, N, inner_dim)
    return out @ params["w_out"].T + params["b_out"]


# ---------------------------------------------------------------------------
if __name__ == "__main__":
    B, N, dim = 2, 16, 64
    heads, dim_head = 4, 32
    inner_dim = heads * dim_head

    key = jax.random.PRNGKey(0)
    k_x, k_qvk, k_wo, k_bo = jax.random.split(key, 4)

    x = jax.random.normal(k_x, (B, N, dim), dtype=jnp.float32)
    params = {
        # nn.Linear(dim, inner_dim * 3, bias=False): weight shape (3*inner, dim)
        "w_qvk": jax.random.normal(k_qvk, (3 * inner_dim, dim), jnp.float32) * 0.05,
        # nn.Linear(inner_dim, dim): weight (dim, inner), bias (dim,)
        "w_out": jax.random.normal(k_wo, (dim, inner_dim), jnp.float32) * 0.05,
        "b_out": jax.random.normal(k_bo, (dim,), jnp.float32) * 0.05,
    }

    fwd = jax.jit(functools.partial(attention_forward, heads=heads, dim_head=dim_head))
    y = jax.block_until_ready(fwd(x, params))

    y_ref = attention_ref(x, params, heads=heads, dim_head=dim_head)
    assert y.shape == (B, N, dim)
    max_diff = float(jnp.max(jnp.abs(y - y_ref)))
    # bf16 MXU operands (f32 accumulation) + approximate EUP reciprocal in the
    # softmax -> tolerance is looser than a pure-f32 comparison would need.
    assert jnp.allclose(y, y_ref, atol=3e-2, rtol=3e-2), (
        f"mismatch vs reference (max abs diff {max_diff})")

    print("KERNEL_OK")
</pallas_src>

<mosaic_0001>
module attributes {stable_mosaic.version = 11 : i64} {
  func.func @_attention_fused_kernel(%arg0: i32, %arg1: memref<1x16x64xf32, #tpu.memory_space<vmem>>, %arg2: memref<384x64xf32, #tpu.memory_space<vmem>>, %arg3: memref<64x128xf32, #tpu.memory_space<vmem>>, %arg4: memref<1x64xf32, #tpu.memory_space<vmem>>, %arg5: memref<1x16x64xf32, #tpu.memory_space<vmem>>) attributes {dimension_semantics = [#tpu.dimension_semantics<parallel>], iteration_bounds = array<i64: 2>, scalar_prefetch = 0 : i64, scratch_operands = 0 : i64, tpu.core_type = #tpu.core_type<tc>, window_params = [{transform_indices = @transform_0, window_bounds = array<i64: 1, 16, 64>}, {pipeline_mode = #tpu.pipeline_mode<synchronous>, transform_indices = @transform_1, window_bounds = array<i64: 384, 64>}, {pipeline_mode = #tpu.pipeline_mode<synchronous>, transform_indices = @transform_2, window_bounds = array<i64: 64, 128>}, {pipeline_mode = #tpu.pipeline_mode<synchronous>, transform_indices = @transform_3, window_bounds = array<i64: 1, 64>}, {transform_indices = @transform_4, window_bounds = array<i64: 1, 16, 64>}]} {
    %c0 = arith.constant 0 : index
    %c0_0 = arith.constant 0 : index
    %c0_1 = arith.constant 0 : index
    %0 = vector.load %arg1[%c0, %c0_0, %c0_1] : memref<1x16x64xf32, #tpu.memory_space<vmem>>, vector<1x16x64xf32>
    %1 = vector.shape_cast %0 : vector<1x16x64xf32> to vector<16x64xf32>
    %2 = arith.truncf %1 : vector<16x64xf32> to vector<16x64xbf16>
    %c0_2 = arith.constant 0 : index
    %c0_3 = arith.constant 0 : index
    %3 = vector.load %arg2[%c0_2, %c0_3] : memref<384x64xf32, #tpu.memory_space<vmem>>, vector<384x64xf32>
    %4 = arith.truncf %3 : vector<384x64xf32> to vector<384x64xbf16>
    %cst = arith.constant dense<0.000000e+00> : vector<16x384xf32>
    %5 = tpu.matmul %2, %4, %cst {dimension_numbers = #tpu.dot_dimension_numbers<[1], [1], [0], [0], [0, 0, 1, 0], [], []>} : vector<16x64xbf16>, vector<384x64xbf16>, vector<16x384xf32> -> vector<16x384xf32>
    %6 = arith.truncf %5 : vector<16x384xf32> to vector<16x384xbf16>
    %7 = vector.extract_strided_slice %6 {offsets = [0, 0], sizes = [16, 128], strides = [1, 1]} : vector<16x384xbf16> to vector<16x128xbf16>
    %8 = vector.extract_strided_slice %6 {offsets = [0, 128], sizes = [16, 128], strides = [1, 1]} : vector<16x384xbf16> to vector<16x128xbf16>
    %9 = vector.extract_strided_slice %6 {offsets = [0, 256], sizes = [16, 128], strides = [1, 1]} : vector<16x384xbf16> to vector<16x128xbf16>
    %10 = vector.extract_strided_slice %7 {offsets = [0, 0], sizes = [16, 32], strides = [1, 1]} : vector<16x128xbf16> to vector<16x32xbf16>
    %11 = vector.extract_strided_slice %8 {offsets = [0, 0], sizes = [16, 32], strides = [1, 1]} : vector<16x128xbf16> to vector<16x32xbf16>
    %12 = vector.extract_strided_slice %9 {offsets = [0, 0], sizes = [16, 32], strides = [1, 1]} : vector<16x128xbf16> to vector<16x32xbf16>
    %cst_4 = arith.constant dense<0.000000e+00> : vector<16x16xf32>
    %13 = tpu.matmul %10, %12, %cst_4 {dimension_numbers = #tpu.dot_dimension_numbers<[1], [1], [0], [0], [0, 0, 1, 0], [], []>} : vector<16x32xbf16>, vector<16x32xbf16>, vector<16x16xf32> -> vector<16x16xf32>
    %cst_5 = arith.constant dense<0xFF800000> : vector<16xf32>
    %14 = vector.multi_reduction <maximumf>, %13, %cst_5 [1] : vector<16x16xf32> to vector<16xf32>
    %15 = vector.shape_cast %14 : vector<16xf32> to vector<16x1xf32>
    %16 = vector.broadcast %15 : vector<16x1xf32> to vector<16x16xf32>
    %17 = arith.subf %13, %16 : vector<16x16xf32>
    %18 = math.exp %17 : vector<16x16xf32>
    %cst_6 = arith.constant dense<0.000000e+00> : vector<16xf32>
    %19 = vector.multi_reduction <add>, %18, %cst_6 [1] : vector<16x16xf32> to vector<16xf32>
    %20 = vector.shape_cast %19 : vector<16xf32> to vector<16x1xf32>
    %21 = tpu.reciprocal %20 {approx = true} : vector<16x1xf32> -> vector<16x1xf32>
    %22 = vector.broadcast %21 : vector<16x1xf32> to vector<16x16xf32>
    %23 = arith.mulf %18, %22 : vector<16x16xf32>
    %24 = arith.truncf %23 : vector<16x16xf32> to vector<16x16xbf16>
    %cst_7 = arith.constant dense<0.000000e+00> : vector<16x32xf32>
    %25 = tpu.matmul %24, %11, %cst_7 {dimension_numbers = #tpu.dot_dimension_numbers<[1], [0], [0], [1], [0, 0, 1, 1], [], []>} : vector<16x16xbf16>, vector<16x32xbf16>, vector<16x32xf32> -> vector<16x32xf32>
    %26 = vector.extract_strided_slice %7 {offsets = [0, 32], sizes = [16, 32], strides = [1, 1]} : vector<16x128xbf16> to vector<16x32xbf16>
    %27 = vector.extract_strided_slice %8 {offsets = [0, 32], sizes = [16, 32], strides = [1, 1]} : vector<16x128xbf16> to vector<16x32xbf16>
    %28 = vector.extract_strided_slice %9 {offsets = [0, 32], sizes = [16, 32], strides = [1, 1]} : vector<16x128xbf16> to vector<16x32xbf16>
    %cst_8 = arith.constant dense<0.000000e+00> : vector<16x16xf32>
    %29 = tpu.matmul %26, %28, %cst_8 {dimension_numbers = #tpu.dot_dimension_numbers<[1], [1], [0], [0], [0, 0, 1, 0], [], []>} : vector<16x32xbf16>, vector<16x32xbf16>, vector<16x16xf32> -> vector<16x16xf32>
    %cst_9 = arith.constant dense<0xFF800000> : vector<16xf32>
    %30 = vector.multi_reduction <maximumf>, %29, %cst_9 [1] : vector<16x16xf32> to vector<16xf32>
    %31 = vector.shape_cast %30 : vector<16xf32> to vector<16x1xf32>
    %32 = vector.broadcast %31 : vector<16x1xf32> to vector<16x16xf32>
    %33 = arith.subf %29, %32 : vector<16x16xf32>
    %34 = math.exp %33 : vector<16x16xf32>
    %cst_10 = arith.constant dense<0.000000e+00> : vector<16xf32>
    %35 = vector.multi_reduction <add>, %34, %cst_10 [1] : vector<16x16xf32> to vector<16xf32>
    %36 = vector.shape_cast %35 : vector<16xf32> to vector<16x1xf32>
    %37 = tpu.reciprocal %36 {approx = true} : vector<16x1xf32> -> vector<16x1xf32>
    %38 = vector.broadcast %37 : vector<16x1xf32> to vector<16x16xf32>
    %39 = arith.mulf %34, %38 : vector<16x16xf32>
    %40 = arith.truncf %39 : vector<16x16xf32> to vector<16x16xbf16>
    %cst_11 = arith.constant dense<0.000000e+00> : vector<16x32xf32>
    %41 = tpu.matmul %40, %27, %cst_11 {dimension_numbers = #tpu.dot_dimension_numbers<[1], [0], [0], [1], [0, 0, 1, 1], [], []>} : vector<16x16xbf16>, vector<16x32xbf16>, vector<16x32xf32> -> vector<16x32xf32>
    %42 = vector.extract_strided_slice %7 {offsets = [0, 64], sizes = [16, 32], strides = [1, 1]} : vector<16x128xbf16> to vector<16x32xbf16>
    %43 = vector.extract_strided_slice %8 {offsets = [0, 64], sizes = [16, 32], strides = [1, 1]} : vector<16x128xbf16> to vector<16x32xbf16>
    %44 = vector.extract_strided_slice %9 {offsets = [0, 64], sizes = [16, 32], strides = [1, 1]} : vector<16x128xbf16> to vector<16x32xbf16>
    %cst_12 = arith.constant dense<0.000000e+00> : vector<16x16xf32>
    %45 = tpu.matmul %42, %44, %cst_12 {dimension_numbers = #tpu.dot_dimension_numbers<[1], [1], [0], [0], [0, 0, 1, 0], [], []>} : vector<16x32xbf16>, vector<16x32xbf16>, vector<16x16xf32> -> vector<16x16xf32>
    %cst_13 = arith.constant dense<0xFF800000> : vector<16xf32>
    %46 = vector.multi_reduction <maximumf>, %45, %cst_13 [1] : vector<16x16xf32> to vector<16xf32>
    %47 = vector.shape_cast %46 : vector<16xf32> to vector<16x1xf32>
    %48 = vector.broadcast %47 : vector<16x1xf32> to vector<16x16xf32>
    %49 = arith.subf %45, %48 : vector<16x16xf32>
    %50 = math.exp %49 : vector<16x16xf32>
    %cst_14 = arith.constant dense<0.000000e+00> : vector<16xf32>
    %51 = vector.multi_reduction <add>, %50, %cst_14 [1] : vector<16x16xf32> to vector<16xf32>
    %52 = vector.shape_cast %51 : vector<16xf32> to vector<16x1xf32>
    %53 = tpu.reciprocal %52 {approx = true} : vector<16x1xf32> -> vector<16x1xf32>
    %54 = vector.broadcast %53 : vector<16x1xf32> to vector<16x16xf32>
    %55 = arith.mulf %50, %54 : vector<16x16xf32>
    %56 = arith.truncf %55 : vector<16x16xf32> to vector<16x16xbf16>
    %cst_15 = arith.constant dense<0.000000e+00> : vector<16x32xf32>
    %57 = tpu.matmul %56, %43, %cst_15 {dimension_numbers = #tpu.dot_dimension_numbers<[1], [0], [0], [1], [0, 0, 1, 1], [], []>} : vector<16x16xbf16>, vector<16x32xbf16>, vector<16x32xf32> -> vector<16x32xf32>
    %58 = vector.extract_strided_slice %7 {offsets = [0, 96], sizes = [16, 32], strides = [1, 1]} : vector<16x128xbf16> to vector<16x32xbf16>
    %59 = vector.extract_strided_slice %8 {offsets = [0, 96], sizes = [16, 32], strides = [1, 1]} : vector<16x128xbf16> to vector<16x32xbf16>
    %60 = vector.extract_strided_slice %9 {offsets = [0, 96], sizes = [16, 32], strides = [1, 1]} : vector<16x128xbf16> to vector<16x32xbf16>
    %cst_16 = arith.constant dense<0.000000e+00> : vector<16x16xf32>
    %61 = tpu.matmul %58, %60, %cst_16 {dimension_numbers = #tpu.dot_dimension_numbers<[1], [1], [0], [0], [0, 0, 1, 0], [], []>} : vector<16x32xbf16>, vector<16x32xbf16>, vector<16x16xf32> -> vector<16x16xf32>
    %cst_17 = arith.constant dense<0xFF800000> : vector<16xf32>
    %62 = vector.multi_reduction <maximumf>, %61, %cst_17 [1] : vector<16x16xf32> to vector<16xf32>
    %63 = vector.shape_cast %62 : vector<16xf32> to vector<16x1xf32>
    %64 = vector.broadcast %63 : vector<16x1xf32> to vector<16x16xf32>
    %65 = arith.subf %61, %64 : vector<16x16xf32>
    %66 = math.exp %65 : vector<16x16xf32>
    %cst_18 = arith.constant dense<0.000000e+00> : vector<16xf32>
    %67 = vector.multi_reduction <add>, %66, %cst_18 [1] : vector<16x16xf32> to vector<16xf32>
    %68 = vector.shape_cast %67 : vector<16xf32> to vector<16x1xf32>
    %69 = tpu.reciprocal %68 {approx = true} : vector<16x1xf32> -> vector<16x1xf32>
    %70 = vector.broadcast %69 : vector<16x1xf32> to vector<16x16xf32>
    %71 = arith.mulf %66, %70 : vector<16x16xf32>
    %72 = arith.truncf %71 : vector<16x16xf32> to vector<16x16xbf16>
    %cst_19 = arith.constant dense<0.000000e+00> : vector<16x32xf32>
    %73 = tpu.matmul %72, %59, %cst_19 {dimension_numbers = #tpu.dot_dimension_numbers<[1], [0], [0], [1], [0, 0, 1, 1], [], []>} : vector<16x16xbf16>, vector<16x32xbf16>, vector<16x32xf32> -> vector<16x32xf32>
    %74 = tpu.concatenate %25, %41, %57, %73 in 1 : vector<16x32xf32>, vector<16x32xf32>, vector<16x32xf32>, vector<16x32xf32> -> vector<16x128xf32>
    %75 = arith.truncf %74 : vector<16x128xf32> to vector<16x128xbf16>
    %c0_20 = arith.constant 0 : index
    %c0_21 = arith.constant 0 : index
    %76 = vector.load %arg3[%c0_20, %c0_21] : memref<64x128xf32, #tpu.memory_space<vmem>>, vector<64x128xf32>
    %77 = arith.truncf %76 : vector<64x128xf32> to vector<64x128xbf16>
    %cst_22 = arith.constant dense<0.000000e+00> : vector<16x64xf32>
    %78 = tpu.matmul %75, %77, %cst_22 {dimension_numbers = #tpu.dot_dimension_numbers<[1], [1], [0], [0], [0, 0, 1, 0], [], []>} : vector<16x128xbf16>, vector<64x128xbf16>, vector<16x64xf32> -> vector<16x64xf32>
    %c0_23 = arith.constant 0 : index
    %c0_24 = arith.constant 0 : index
    %79 = vector.load %arg4[%c0_23, %c0_24] : memref<1x64xf32, #tpu.memory_space<vmem>>, vector<1x64xf32>
    %80 = vector.broadcast %79 : vector<1x64xf32> to vector<16x64xf32>
    %81 = arith.addf %78, %80 : vector<16x64xf32>
    %c0_25 = arith.constant 0 : index
    %c0_26 = arith.constant 0 : index
    %c0_27 = arith.constant 0 : index
    %82 = vector.load %arg5[%c0_25, %c0_26, %c0_27] : memref<1x16x64xf32, #tpu.memory_space<vmem>>, vector<1x16x64xf32>
    %83 = vector.shape_cast %82 : vector<1x16x64xf32> to vector<16x64xf32>
    %84 = vector.shape_cast %81 : vector<16x64xf32> to vector<1x16x64xf32>
    tpu.vector_store %arg5[%c0_25, %c0_26, %c0_27], %84 {strides = array<i32>} : memref<1x16x64xf32, #tpu.memory_space<vmem>>, vector<1x16x64xf32>,
    return
  }
  func.func @transform_0(%arg0: i32) -> (i32, i32, i32) {
    %c0_i32 = arith.constant 0 : i32
    %c0_i32_0 = arith.constant 0 : i32
    %c0_i32_1 = arith.constant 0 : i32
    return %arg0, %c0_i32, %c0_i32_0 : i32, i32, i32
  }
  func.func @transform_1(%arg0: i32) -> (i32, i32) {
    %c0_i32 = arith.constant 0 : i32
    %c0_i32_0 = arith.constant 0 : i32
    %c0_i32_1 = arith.constant 0 : i32
    return %c0_i32, %c0_i32_0 : i32, i32
  }
  func.func @transform_2(%arg0: i32) -> (i32, i32) {
    %c0_i32 = arith.constant 0 : i32
    %c0_i32_0 = arith.constant 0 : i32
    %c0_i32_1 = arith.constant 0 : i32
    return %c0_i32, %c0_i32_0 : i32, i32
  }
  func.func @transform_3(%arg0: i32) -> (i32, i32) {
    %c0_i32 = arith.constant 0 : i32
    %c0_i32_0 = arith.constant 0 : i32
    %c0_i32_1 = arith.constant 0 : i32
    return %c0_i32, %c0_i32_0 : i32, i32
  }
  func.func @transform_4(%arg0: i32) -> (i32, i32, i32) {
    %c0_i32 = arith.constant 0 : i32
    %c0_i32_0 = arith.constant 0 : i32
    %c0_i32_1 = arith.constant 0 : i32
    return %arg0, %c0_i32, %c0_i32_0 : i32, i32, i32
  }
}

</mosaic_0001>

<llo_original>
// kernel: attention_forward.1
$region0: #{attention_forward.1}
  #allocation0 [shape = 'u32[]', space=smem, size = 0x4, offset = 0x4, fixed_abs, tag = 'smem constant byte address 0x4 - core index']
  #allocation1 [shape = 'u32[144,128]{1,0:T(1,128)}', space=vmem, size = 0x12000, scoped, tag = 'internal scratch']
  %s0 = inlined_call_operand.vmem [shape: f32[2,16,64], index: 0, kind: input, shape index: {}]
  %s1 = inlined_call_operand.vmem [shape: f32[384,64], index: 1, kind: input, shape index: {}]
  %s2 = inlined_call_operand.vmem [shape: f32[64,128], index: 2, kind: input, shape index: {}]
  %s3 = inlined_call_operand.vmem [shape: f32[1,64], index: 3, kind: input, shape index: {}]
  %s4 = inlined_call_operand.hbm [shape: f32[2,16,64], index: 4, kind: output, shape index: {}]
  %s5 = sld [smem:[#allocation0]]
  $region49: #{attention_forward.1} parent=0
    _
  %s7 = ssub.s32 1, %s5
  %s8 = scalar_select 0, %s7, %s5
  $region1: #{attention_forward.1} parent=0
    #allocation2 [shape = 'u8[16384]{0}', space=vmem, size = 0x4000, scoped, tag = 'output window, operand 0']
    #allocation3 [shape = 's32[2]{0}', space=sflag, size = 0x8, scoped, tag = 'scoped memory for attention_forward.1']
    %9 = vsyncpa [#allocation3], 0
    %s10 = scalar_lea.sflag [#allocation3], 1
    %11 = vsyncpa %s10, 0
    loop: start=0, step=1, limit=4
    $region2: #{attention_forward.1} parent=1 // loop_pre_header
      _
    $region3: #{attention_forward.1} parent=1 // loop_header
      %s13 = sphi 0, %s17
      %p14 = scmp.ge.s32.totalorder %s13, 4
      %s23 = sphi 0, %s25
      %s26 = sphi 0, %s23
      %s27 = sphi 0, %s26
      %s43 = sphi 0, %s27
      %s47 = sphi 0, %s47
      %s49 = sphi 0, %s47
      %s50 = sphi 0, %s49
      %s64 = sphi 0, %s50
      %s68 = sphi 0, %s68
      %s70 = sphi 0, %s68
      %s71 = sphi 0, %s70
      %s85 = sphi 0, %s71
      %s89 = sphi 0, %s89
      %s91 = sphi 0, %s89
      %s92 = sphi 0, %s91
      %s106 = sphi 0, %s92
      %s112 = sphi 0, %s114
      %s115 = sphi 0, %s112
      %s116 = sphi 0, %s115
      %s132 = sphi 0, %s116
    $region4: #{attention_forward.1} parent=1 // loop_header_branch
      %16 = sbr.rel (%p14) target = $region8
    $region5: #{attention_forward.1} parent=1 // loop_body
      %s18 = ssub.s32 %s13, 1
      %s19 = ssub.s32 %s13, 2
      %s20 = sadd.s32 %s13, 1
      %s21 = ssub.s32 %s13, %s20
      %p22 = scmp.eq.s32.totalorder %s21, 0
      %s24 = sadd.s32 %s23, 1
      %s25 = scalar_select %p22, %s23, %s24
      %p28 = pneg %p22
      %p29 = scmp.eq.s32.totalorder %s13, 1
      %p30 = por %p28, %p29
      %p31 = scmp.ne.s32.totalorder %s23, %s26
      %p32 = scmp.eq.s32.totalorder %s13, 0
      %p33 = por %p31, %p32
      %p34 = scmp.ne.s32.totalorder %s23, %s26
      %p35 = scmp.eq.s32.totalorder %s18, 1
      %p36 = por %p34, %p35
      %p37 = scmp.ne.s32.totalorder %s26, %s27
      %p38 = scmp.eq.s32.totalorder %s18, 0
      %p39 = por %p37, %p38
      %p40 = scmp.ne.s32.totalorder %s26, %s27
      %p41 = scmp.eq.s32.totalorder %s19, 1
      %p42 = por %p40, %p41
      %p44 = scmp.ne.s32.totalorder %s27, %s43
      %p45 = scmp.eq.s32.totalorder %s19, 0
      %p46 = por %p44, %p45
      %s48 = sadd.s32 %s47, 1
      %p51 = scmp.eq.s32.totalorder %s13, 1
      %p52 = scmp.ne.s32.totalorder %s47, %s49
      %p53 = scmp.eq.s32.totalorder %s13, 0
      %p54 = por %p52, %p53
      %p55 = scmp.ne.s32.totalorder %s47, %s49
      %p56 = scmp.eq.s32.totalorder %s18, 1
      %p57 = por %p55, %p56
      %p58 = scmp.ne.s32.totalorder %s49, %s50
      %p59 = scmp.eq.s32.totalorder %s18, 0
      %p60 = por %p58, %p59
      %p61 = scmp.ne.s32.totalorder %s49, %s50
      %p62 = scmp.eq.s32.totalorder %s19, 1
      %p63 = por %p61, %p62
      %p65 = scmp.ne.s32.totalorder %s50, %s64
      %p66 = scmp.eq.s32.totalorder %s19, 0
      %p67 = por %p65, %p66
      %s69 = sadd.s32 %s68, 1
      %p72 = scmp.eq.s32.totalorder %s13, 1
      %p73 = scmp.ne.s32.totalorder %s68, %s70
      %p74 = scmp.eq.s32.totalorder %s13, 0
      %p75 = por %p73, %p74
      %p76 = scmp.ne.s32.totalorder %s68, %s70
      %p77 = scmp.eq.s32.totalorder %s18, 1
      %p78 = por %p76, %p77
      %p79 = scmp.ne.s32.totalorder %s70, %s71
      %p80 = scmp.eq.s32.totalorder %s18, 0
      %p81 = por %p79, %p80
      %p82 = scmp.ne.s32.totalorder %s70, %s71
      %p83 = scmp.eq.s32.totalorder %s19, 1
      %p84 = por %p82, %p83
      %p86 = scmp.ne.s32.totalorder %s71, %s85
      %p87 = scmp.eq.s32.totalorder %s19, 0
      %p88 = por %p86, %p87
      %s90 = sadd.s32 %s89, 1
      %p93 = scmp.eq.s32.totalorder %s13, 1
      %p94 = scmp.ne.s32.totalorder %s89, %s91
      %p95 = scmp.eq.s32.totalorder %s13, 0
      %p96 = por %p94, %p95
      %p97 = scmp.ne.s32.totalorder %s89, %s91
      %p98 = scmp.eq.s32.totalorder %s18, 1
      %p99 = por %p97, %p98
      %p100 = scmp.ne.s32.totalorder %s91, %s92
      %p101 = scmp.eq.s32.totalorder %s18, 0
      %p102 = por %p100, %p101
      %p103 = scmp.ne.s32.totalorder %s91, %s92
      %p104 = scmp.eq.s32.totalorder %s19, 1
      %p105 = por %p103, %p104
      %p107 = scmp.ne.s32.totalorder %s92, %s106
      %p108 = scmp.eq.s32.totalorder %s19, 0
      %p109 = por %p107, %p108
      %s110 = ssub.s32 %s13, %s20
      %p111 = scmp.eq.s32.totalorder %s110, 0
      %s113 = sadd.s32 %s112, 1
      %s114 = scalar_select %p111, %s112, %s113
      %p117 = pneg %p111
      %p118 = scmp.eq.s32.totalorder %s13, 1
      %p119 = por %p117, %p118
      %p120 = scmp.ne.s32.totalorder %s112, %s115
      %p121 = scmp.eq.s32.totalorder %s13, 0
      %p122 = por %p120, %p121
      %p123 = scmp.ne.s32.totalorder %s112, %s115
      %p124 = scmp.eq.s32.totalorder %s18, 1
      %p125 = por %p123, %p124
      %p126 = scmp.ne.s32.totalorder %s115, %s116
      %p127 = scmp.eq.s32.totalorder %s18, 0
      %p128 = por %p126, %p127
      %p129 = scmp.ne.s32.totalorder %s115, %s116
      %p130 = scmp.eq.s32.totalorder %s19, 1
      %p131 = por %p129, %p130
      %p133 = scmp.ne.s32.totalorder %s116, %s132
      %p134 = scmp.eq.s32.totalorder %s19, 0
      %p135 = por %p133, %p134
      %p136 = scmp.le.s32.totalorder 1, %s13
      %p137 = scmp.lt.s32.totalorder %s13, 3
      %p138 = pnand %p136, %p137
      %p139 = pneg %p138
      // Predicated region
      $region9: #{attention_forward.1} parent=5 // pred_check
        _
      $region10: #{attention_forward.1} parent=5 // pred_check_branch
        %141 = sbr.rel (%p138) target = $region12
      $region11: #{attention_forward.1} parent=5 // pred_region
        %s142 = ssub.s32 %s13, 1
        // Predicated region
        $region13: #{attention_forward.1} parent=11 // pred_check
          %p143 = pneg %p60
        $region14: #{attention_forward.1} parent=11 // pred_check_branch
          %145 = sbr.rel (%p143) target = $region16
        $region15: #{attention_forward.1} parent=11 // pred_region
          _
        $region16: #{attention_forward.1} parent=11 // pred_fallthru
          _
        // Predicated region
        $region17: #{attention_forward.1} parent=11 // pred_check
          %p146 = pneg %p81
        $region18: #{attention_forward.1} parent=11 // pred_check_branch
          %148 = sbr.rel (%p146) target = $region20
        $region19: #{attention_forward.1} parent=11 // pred_region
          _
        $region20: #{attention_forward.1} parent=11 // pred_fallthru
          _
        // Predicated region
        $region21: #{attention_forward.1} parent=11 // pred_check
          %p149 = pneg %p102
        $region22: #{attention_forward.1} parent=11 // pred_check_branch
          %151 = sbr.rel (%p149) target = $region24
        $region23: #{attention_forward.1} parent=11 // pred_region
          _
        $region24: #{attention_forward.1} parent=11 // pred_fallthru
          _
      $region12: #{attention_forward.1} parent=5 // pred_fallthru
        _
      %p152 = scmp.lt.s32.totalorder %s13, 2
      // Predicated region
      $region25: #{attention_forward.1} parent=5 // pred_check
        %p153 = pneg %p152
      $region26: #{attention_forward.1} parent=5 // pred_check_branch
        %155 = sbr.rel (%p153) target = $region28
      $region27: #{attention_forward.1} parent=5 // pred_region
        // Predicated region
        $region29: #{attention_forward.1} parent=27 // pred_check
          %p156 = pneg %p33
        $region30: #{attention_forward.1} parent=27 // pred_check_branch
          %158 = sbr.rel (%p156) target = $region32
        $region31: #{attention_forward.1} parent=27 // pred_region
          %p159 = scmp.lt.s32.totalorder %s13, 1
          %s160 = scalar_select %p159, %s13, 1
          %s161 = smul.addr %s160, 2
          %s162 = smul.addr %s161, 8
          %s163 = scalar_lea.vmem %s0, %s162
        $region32: #{attention_forward.1} parent=27 // pred_fallthru
          _
      $region28: #{attention_forward.1} parent=5 // pred_fallthru
        _
      %p164 = scmp.le.s32.totalorder 1, %s13
      %p165 = scmp.lt.s32.totalorder %s13, 3
      %p166 = pnand %p164, %p165
      %p167 = pneg %p166
      // Predicated region
      $region33: #{attention_forward.1} parent=5 // pred_check
        _
      $region34: #{attention_forward.1} parent=5 // pred_check_branch
        %169 = sbr.rel (%p166) target = $region36
      $region35: #{attention_forward.1} parent=5 // pred_region
        %s170 = ssub.s32 %s13, 1
        %p171 = scmp.lt.s32.totalorder %s18, 1
        %s172 = scalar_select %p171, %s18, 1
        %s173 = smul.addr %s172, 2
        %s174 = smul.addr %s173, 8
        %s175 = scalar_lea.vmem %s0, %s174
        %p176 = pneg %p39
        %p177 = pneg %p36
        %p178 = pneg %p60
        %p179 = pneg %p57
        %p180 = pneg %p81
        %p181 = pneg %p78
        %p182 = pneg %p102
        %p183 = pneg %p99
        %p184 = pneg %p128
        %p185 = pneg %p125
        %s186 = sand.u32 %s115, 1
        %s187 = scalar_lea.sflag [#allocation3], %s186
        %s188 = sand.u32 %s115, 1
        %s189 = smul.addr %s188, 16
        %s190 = scalar_lea.vmem [#allocation2], %s189
        %p191 = scmp.lt.s32.totalorder %s18, 1
        %s192 = scalar_select %p191, %s18, 1
        %s193 = smul.addr %s192, 2
        %s194 = smul.addr %s193, 8
        %s195 = scalar_lea.vmem %s0, %s194
        %v197 = vld [vmem:[%s195] sm:$0xff]
        %v198 = vld [vmem:[%s195 + $0x8] sm:$0xff]
        %v199 = vpack.c.bf16 %v198, %v197
        %v200 = vld [vmem:[%s1] sm:$0xff]
        %v201 = vld [vmem:[%s1 + $0x8] sm:$0xff]
        %v202 = vld [vmem:[%s1 + $0x10] sm:$0xff]
        %v203 = vld [vmem:[%s1 + $0x18] sm:$0xff]
        %v204 = vld [vmem:[%s1 + $0x20] sm:$0xff]
        %v205 = vld [vmem:[%s1 + $0x28] sm:$0xff]
        %v206 = vld [vmem:[%s1 + $0x30] sm:$0xff]
        %v207 = vld [vmem:[%s1 + $0x38] sm:$0xff]
        %v208 = vld [vmem:[%s1 + $0x40] sm:$0xff]
        %v209 = vld [vmem:[%s1 + $0x48] sm:$0xff]
        %v210 = vld [vmem:[%s1 + $0x50] sm:$0xff]
        %v211 = vld [vmem:[%s1 + $0x58] sm:$0xff]
        %v212 = vld [vmem:[%s1 + $0x60] sm:$0xff]
        %v213 = vld [vmem:[%s1 + $0x68] sm:$0xff]
        %v214 = vld [vmem:[%s1 + $0x70] sm:$0xff]
        %v215 = vld [vmem:[%s1 + $0x78] sm:$0xff]
        %v216 = vld [vmem:[%s1 + $0x80] sm:$0xff]
        %v217 = vld [vmem:[%s1 + $0x88] sm:$0xff]
        %v218 = vld [vmem:[%s1 + $0x90] sm:$0xff]
        %v219 = vld [vmem:[%s1 + $0x98] sm:$0xff]
        %v220 = vld [vmem:[%s1 + $0xa0] sm:$0xff]
        %v221 = vld [vmem:[%s1 + $0xa8] sm:$0xff]
        %v222 = vld [vmem:[%s1 + $0xb0] sm:$0xff]
        %v223 = vld [vmem:[%s1 + $0xb8] sm:$0xff]
        %v224 = vld [vmem:[%s1 + $0xc0] sm:$0xff]
        %v225 = vld [vmem:[%s1 + $0xc8] sm:$0xff]
        %v226 = vld [vmem:[%s1 + $0xd0] sm:$0xff]
        %v227 = vld [vmem:[%s1 + $0xd8] sm:$0xff]
        %v228 = vld [vmem:[%s1 + $0xe0] sm:$0xff]
        %v229 = vld [vmem:[%s1 + $0xe8] sm:$0xff]
        %v230 = vld [vmem:[%s1 + $0xf0] sm:$0xff]
        %v231 = vld [vmem:[%s1 + $0xf8] sm:$0xff]
        %v232 = vld [vmem:[%s1 + $0x100] sm:$0xff]
        %v233 = vld [vmem:[%s1 + $0x108] sm:$0xff]
        %v234 = vld [vmem:[%s1 + $0x110] sm:$0xff]
        %v235 = vld [vmem:[%s1 + $0x118] sm:$0xff]
        %v236 = vld [vmem:[%s1 + $0x120] sm:$0xff]
        %v237 = vld [vmem:[%s1 + $0x128] sm:$0xff]
        %v238 = vld [vmem:[%s1 + $0x130] sm:$0xff]
        %v239 = vld [vmem:[%s1 + $0x138] sm:$0xff]
        %v240 = vld [vmem:[%s1 + $0x140] sm:$0xff]
        %v241 = vld [vmem:[%s1 + $0x148] sm:$0xff]
        %v242 = vld [vmem:[%s1 + $0x150] sm:$0xff]
        %v243 = vld [vmem:[%s1 + $0x158] sm:$0xff]
        %v244 = vld [vmem:[%s1 + $0x160] sm:$0xff]
        %v245 = vld [vmem:[%s1 + $0x168] sm:$0xff]
        %v246 = vld [vmem:[%s1 + $0x170] sm:$0xff]
        %v247 = vld [vmem:[%s1 + $0x178] sm:$0xff]
        %v248 = vpack.c.bf16 %v201, %v200
        %v249 = vpack.c.bf16 %v203, %v202
        %v250 = vpack.c.bf16 %v205, %v204
        %v251 = vpack.c.bf16 %v207, %v206
        %v252 = vpack.c.bf16 %v209, %v208
        %v253 = vpack.c.bf16 %v211, %v210
        %v254 = vpack.c.bf16 %v213, %v212
        %v255 = vpack.c.bf16 %v215, %v214
        %v256 = vpack.c.bf16 %v217, %v216
        %v257 = vpack.c.bf16 %v219, %v218
        %v258 = vpack.c.bf16 %v221, %v220
        %v259 = vpack.c.bf16 %v223, %v222
        %v260 = vpack.c.bf16 %v225, %v224
        %v261 = vpack.c.bf16 %v227, %v226
        %v262 = vpack.c.bf16 %v229, %v228
        %v263 = vpack.c.bf16 %v231, %v230
        %v264 = vpack.c.bf16 %v233, %v232
        %v265 = vpack.c.bf16 %v235, %v234
        %v266 = vpack.c.bf16 %v237, %v236
        %v267 = vpack.c.bf16 %v239, %v238
        %v268 = vpack.c.bf16 %v241, %v240
        %v269 = vpack.c.bf16 %v243, %v242
        %v270 = vpack.c.bf16 %v245, %v244
        %v271 = vpack.c.bf16 %v247, %v246
        %vm272 = vcmask 523264
        %v274 = vsel %vm272, %v199, 0
        %v277 = vsel %vm272, %v248, 0
        %v280 = vsel %vm272, %v249, 0
        %v283 = vsel %vm272, %v250, 0
        %v286 = vsel %vm272, %v251, 0
        %v289 = vsel %vm272, %v252, 0
        %v292 = vsel %vm272, %v253, 0
        %v295 = vsel %vm272, %v254, 0
        %v298 = vsel %vm272, %v255, 0
        %v301 = vsel %vm272, %v256, 0
        %v304 = vsel %vm272, %v257, 0
        %v307 = vsel %vm272, %v258, 0
        %v310 = vsel %vm272, %v259, 0
        %v313 = vsel %vm272, %v260, 0
        %v316 = vsel %vm272, %v261, 0
        %v319 = vsel %vm272, %v262, 0
        %v322 = vsel %vm272, %v263, 0
        %v325 = vsel %vm272, %v264, 0
        %v328 = vsel %vm272, %v265, 0
        %v331 = vsel %vm272, %v266, 0
        %v334 = vsel %vm272, %v267, 0
        %v337 = vsel %vm272, %v268, 0
        %v340 = vsel %vm272, %v269, 0
        %v343 = vsel %vm272, %v270, 0
        %v346 = vsel %vm272, %v271, 0
        %348 = vmatprep.subr.bf16.mxu0 0
        %349 = vmatpush1.bf16.xpose.msra.mxu0 %v277
        %350 = vmatprep.subr.bf16.mxu0 0
        %351 = vmatpush1.bf16.xpose.msra.mxu0 %v280
        %352 = vmatprep.subr.bf16.mxu0 0
        %353 = vmatpush1.bf16.xpose.msra.mxu0 %v283
        %354 = vmatprep.subr.bf16.mxu0 0
        %355 = vmatpush1.bf16.xpose.msra.mxu0 %v286
        %356 = vmatprep.subr.bf16.mxu0 0
        %357 = vmatpush1.bf16.xpose.msra.mxu0 %v289
        %358 = vmatprep.subr.bf16.mxu0 0
        %359 = vmatpush1.bf16.xpose.msra.mxu0 %v292
        %360 = vmatprep.subr.bf16.mxu0 0
        %361 = vmatpush1.bf16.xpose.msra.mxu0 %v295
        %362 = vmatprep.subr.bf16.mxu0 0
        %363 = vmatpush1.bf16.xpose.msra.mxu0 %v298
        %364 = vmatprep.subr.bf16.mxu0 0
        %365 = vmatpush1.bf16.xpose.msra.mxu0 %v301
        %366 = vmatprep.subr.bf16.mxu0 0
        %367 = vmatpush1.bf16.xpose.msra.mxu0 %v304
        %368 = vmatprep.subr.bf16.mxu0 0
        %369 = vmatpush1.bf16.xpose.msra.mxu0 %v307
        %370 = vmatprep.subr.bf16.mxu0 0
        %371 = vmatpush1.bf16.xpose.msra.mxu0 %v310
        %372 = vmatprep.subr.bf16.mxu0 0
        %373 = vmatpush1.bf16.xpose.msra.mxu0 %v313
        %374 = vmatprep.subr.bf16.mxu0 0
        %375 = vmatpush1.bf16.xpose.msra.mxu0 %v316
        %376 = vmatprep.subr.bf16.mxu0 0
        %377 = vmatpush1.bf16.xpose.msra.mxu0 %v319
        %378 = vmatprep.subr.bf16.mxu0 0
        %379 = vmatpush1.bf16.xpose.msra.mxu0 %v322
        %380 = vmatprep.mubr.bf16.mxu0 0
        %381 = vmatmul.mubr.bf16.gmra.mrb[0].mxu0 %v274
        %v382 = vpop.f32.mrb[0].mxu0
        %v383 = vadd.f32 0.0, %v382
        %v384 = vpop.f32.mrb[0].mxu0
        %v385 = vadd.f32 0.0, %v384
        %v386 = vpop.f32.mrb[0].mxu0
        %v387 = vadd.f32 0.0, %v386
        %v388 = vpop.f32.mrb[0].mxu0
        %v389 = vadd.f32 0.0, %v388
        %390 = vdwg.mxu0
        %391 = vmatprep.subr.bf16.mxu0 0
        %392 = vmatpush1.bf16.xpose.msra.mxu0 %v325
        %393 = vmatprep.subr.bf16.mxu0 0
        %394 = vmatpush1.bf16.xpose.msra.mxu0 %v328
        %395 = vmatprep.subr.bf16.mxu0 0
        %396 = vmatpush1.bf16.xpose.msra.mxu0 %v331
        %397 = vmatprep.subr.bf16.mxu0 0
        %398 = vmatpush1.bf16.xpose.msra.mxu0 %v334
        %399 = vmatprep.subr.bf16.mxu0 0
        %400 = vmatpush1.bf16.xpose.msra.mxu0 %v337
        %401 = vmatprep.subr.bf16.mxu0 0
        %402 = vmatpush1.bf16.xpose.msra.mxu0 %v340
        %403 = vmatprep.subr.bf16.mxu0 0
        %404 = vmatpush1.bf16.xpose.msra.mxu0 %v343
        %405 = vmatprep.subr.bf16.mxu0 0
        %406 = vmatpush1.bf16.xpose.msra.mxu0 %v346
        %407 = vmatprep.subr.bf16.mxu0 0
        %408 = vmatpush1.bf16.xpose.msra.mxu0 0
        %409 = vmatprep.subr.bf16.mxu0 0
        %410 = vmatpush1.bf16.xpose.msra.mxu0 0
        %411 = vmatprep.subr.bf16.mxu0 0
        %412 = vmatpush1.bf16.xpose.msra.mxu0 0
        %413 = vmatprep.subr.bf16.mxu0 0
        %414 = vmatpush1.bf16.xpose.msra.mxu0 0
        %415 = vmatprep.subr.bf16.mxu0 0
        %416 = vmatpush1.bf16.xpose.msra.mxu0 0
        %417 = vmatprep.subr.bf16.mxu0 0
        %418 = vmatpush1.bf16.xpose.msra.mxu0 0
        %419 = vmatprep.subr.bf16.mxu0 0
        %420 = vmatpush1.bf16.xpose.msra.mxu0 0
        %421 = vmatprep.subr.bf16.mxu0 0
        %422 = vmatpush1.bf16.xpose.msra.mxu0 0
        %423 = vmatprep.mubr.bf16.mxu0 0
        %424 = vmatmul.mubr.bf16.gmra.mrb[0].mxu0 %v274
        %v425 = vpop.f32.mrb[0].mxu0
        %v426 = vadd.f32 0.0, %v425
        %v427 = vpop.f32.mrb[0].mxu0
        %v428 = vpop.f32.mrb[0].mxu0
        %v429 = vadd.f32 0.0, %v428
        %v430 = vpop.f32.mrb[0].mxu0
        %431 = vdwg.mxu0
        %v432 = vpack.c.bf16 %v387, %v383
        %v433 = vpack.c.bf16 %v389, %v385
        %v434 = vpack.c.bf16 %v429, %v426
        %vm435 = vcmask 261120
        %v437 = vsel %vm435, %v432, 0
        %v440 = vsel %vm435, %v434, 0
        %442 = vmatprep.subr.bf16.mxu0 0
        %443 = vmatpush1.bf16.xpose.msra.mxu0 %v440
        %444 = vmatprep.subr.bf16.mxu0 0
        %445 = vmatpush1.bf16.xpose.msra.mxu0 0
        %446 = vmatprep.subr.bf16.mxu0 0
        %447 = vmatpush1.bf16.xpose.msra.mxu0 0
        %448 = vmatprep.subr.bf16.mxu0 0
        %449 = vmatpush1.bf16.xpose.msra.mxu0 0
        %450 = vmatprep.subr.bf16.mxu0 0
        %451 = vmatpush1.bf16.xpose.msra.mxu0 0
        %452 = vmatprep.subr.bf16.mxu0 0
        %453 = vmatpush1.bf16.xpose.msra.mxu0 0
        %454 = vmatprep.subr.bf16.mxu0 0
        %455 = vmatpush1.bf16.xpose.msra.mxu0 0
        %456 = vmatprep.subr.bf16.mxu0 0
        %457 = vmatpush1.bf16.xpose.msra.mxu0 0
        %458 = vmatprep.subr.bf16.mxu0 0
        %459 = vmatpush1.bf16.xpose.msra.mxu0 0
        %460 = vmatprep.subr.bf16.mxu0 0
        %461 = vmatpush1.bf16.xpose.msra.mxu0 0
        %462 = vmatprep.subr.bf16.mxu0 0
        %463 = vmatpush1.bf16.xpose.msra.mxu0 0
        %464 = vmatprep.subr.bf16.mxu0 0
        %465 = vmatpush1.bf16.xpose.msra.mxu0 0
        %466 = vmatprep.subr.bf16.mxu0 0
        %467 = vmatpush1.bf16.xpose.msra.mxu0 0
        %468 = vmatprep.subr.bf16.mxu0 0
        %469 = vmatpush1.bf16.xpose.msra.mxu0 0
        %470 = vmatprep.subr.bf16.mxu0 0
        %471 = vmatpush1.bf16.xpose.msra.mxu0 0
        %472 = vmatprep.subr.bf16.mxu0 0
        %473 = vmatpush1.bf16.xpose.msra.mxu0 0
        %474 = vmatprep.mubr.bf16.mxu0 0
        %475 = vmatmul.mubr.bf16.gmra.mrb[0].mxu0 %v437
        %v476 = vpop.f32.mrb[0].mxu0
        %v477 = vadd.f32 0.0, %v476
        %v478 = vpop.f32.mrb[0].mxu0
        %v479 = vpop.f32.mrb[0].mxu0
        %v480 = vadd.f32 0.0, %v479
        %v481 = vpop.f32.mrb[0].mxu0
        %482 = vdwg.mxu0
        %vm483 = vcmask 130048
        %v484 = vsel %vm483, %v477, -inf
        %485 = vmax.xlane.f32.xlu0 %v484
        %v486 = vpop.xlane.xlu0 %485
        %v487 = vsel %vm483, %v480, -inf
        %488 = vmax.xlane.f32.xlu0 %v487
        %v489 = vpop.xlane.xlu0 %488
        %v490 = vsub.f32 %v477, %v486
        %v491 = vsub.f32 %v480, %v489
        %v492 = vmul.f32 %v490, 1.442695
        %v493 = vpow.pop %v492
        %v494 = vmul.f32 %v491, 1.442695
        %v495 = vpow.pop %v494
        %v496 = vsel %vm483, %v493, 0.0
        %497 = vadd.xlane.f32.xlu0 %v496
        %v498 = vpop.xlane.xlu0 %497
        %v499 = vsel %vm483, %v495, 0.0
        %500 = vadd.xlane.f32.xlu0 %v499
        %v501 = vpop.xlane.xlu0 %500
        %v502 = vrcp.pop %v498
        %v503 = vrcp.pop %v501
        %v504 = vmul.f32 %v493, %v502
        %v505 = vmul.f32 %v495, %v503
        %v506 = vpack.c.bf16 %v505, %v504
        %v508 = vsel %vm483, %v506, 0
        %510 = vmatprep.subr.bf16.mxu0 0
        %511 = vmatpush1.bf16.msra.mxu0 %v433
        %512 = vmatprep.subr.bf16.mxu0 0
        %513 = vmatpush1.bf16.msra.mxu0 0
        %514 = vmatprep.subr.bf16.mxu0 0
        %515 = vmatpush1.bf16.msra.mxu0 0
        %516 = vmatprep.subr.bf16.mxu0 0
        %517 = vmatpush1.bf16.msra.mxu0 0
        %518 = vmatprep.subr.bf16.mxu0 0
        %519 = vmatpush1.bf16.msra.mxu0 0
        %520 = vmatprep.subr.bf16.mxu0 0
        %521 = vmatpush1.bf16.msra.mxu0 0
        %522 = vmatprep.subr.bf16.mxu0 0
        %523 = vmatpush1.bf16.msra.mxu0 0
        %524 = vmatprep.subr.bf16.mxu0 0
        %525 = vmatpush1.bf16.msra.mxu0 0
        %526 = vmatprep.subr.bf16.mxu0 0
        %527 = vmatpush1.bf16.msra.mxu0 0
        %528 = vmatprep.subr.bf16.mxu0 0
        %529 = vmatpush1.bf16.msra.mxu0 0
        %530 = vmatprep.subr.bf16.mxu0 0
        %531 = vmatpush1.bf16.msra.mxu0 0
        %532 = vmatprep.subr.bf16.mxu0 0
        %533 = vmatpush1.bf16.msra.mxu0 0
        %534 = vmatprep.subr.bf16.mxu0 0
        %535 = vmatpush1.bf16.msra.mxu0 0
        %536 = vmatprep.subr.bf16.mxu0 0
        %537 = vmatpush1.bf16.msra.mxu0 0
        %538 = vmatprep.subr.bf16.mxu0 0
        %539 = vmatpush1.bf16.msra.mxu0 0
        %540 = vmatprep.subr.bf16.mxu0 0
        %541 = vmatpush1.bf16.msra.mxu0 0
        %542 = vmatprep.mubr.bf16.mxu0 0
        %543 = vmatmul.mubr.bf16.gmra.mrb[0].mxu0 %v508
        %v544 = vpop.f32.mrb[0].mxu0
        %v545 = vadd.f32 0.0, %v544
        %v546 = vpop.f32.mrb[0].mxu0
        %v547 = vpop.f32.mrb[0].mxu0
        %v548 = vadd.f32 0.0, %v547
        %v549 = vpop.f32.mrb[0].mxu0
        %550 = vdwg.mxu0
        %552 = vrot.lane.b32.xlu0 %v432, 96
        %v553 = vpop.permute.xlu0 %552
        %555 = vrot.lane.b32.xlu0 %v434, 96
        %v556 = vpop.permute.xlu0 %555
        %v558 = vsel %vm435, %v553, 0
        %v561 = vsel %vm435, %v556, 0
        %563 = vmatprep.subr.bf16.mxu0 0
        %564 = vmatpush1.bf16.xpose.msra.mxu0 %v561
        %565 = vmatprep.subr.bf16.mxu0 0
        %566 = vmatpush1.bf16.xpose.msra.mxu0 0
        %567 = vmatprep.subr.bf16.mxu0 0
        %568 = vmatpush1.bf16.xpose.msra.mxu0 0
        %569 = vmatprep.subr.bf16.mxu0 0
        %570 = vmatpush1.bf16.xpose.msra.mxu0 0
        %571 = vmatprep.subr.bf16.mxu0 0
        %572 = vmatpush1.bf16.xpose.msra.mxu0 0
        %573 = vmatprep.subr.bf16.mxu0 0
        %574 = vmatpush1.bf16.xpose.msra.mxu0 0
        %575 = vmatprep.subr.bf16.mxu0 0
        %576 = vmatpush1.bf16.xpose.msra.mxu0 0
        %577 = vmatprep.subr.bf16.mxu0 0
        %578 = vmatpush1.bf16.xpose.msra.mxu0 0
        %579 = vmatprep.subr.bf16.mxu0 0
        %580 = vmatpush1.bf16.xpose.msra.mxu0 0
        %581 = vmatprep.subr.bf16.mxu0 0
        %582 = vmatpush1.bf16.xpose.msra.mxu0 0
        %583 = vmatprep.subr.bf16.mxu0 0
        %584 = vmatpush1.bf16.xpose.msra.mxu0 0
        %585 = vmatprep.subr.bf16.mxu0 0
        %586 = vmatpush1.bf16.xpose.msra.mxu0 0
        %587 = vmatprep.subr.bf16.mxu0 0
        %588 = vmatpush1.bf16.xpose.msra.mxu0 0
        %589 = vmatprep.subr.bf16.mxu0 0
        %590 = vmatpush1.bf16.xpose.msra.mxu0 0
        %591 = vmatprep.subr.bf16.mxu0 0
        %592 = vmatpush1.bf16.xpose.msra.mxu0 0
        %593 = vmatprep.subr.bf16.mxu0 0
        %594 = vmatpush1.bf16.xpose.msra.mxu0 0
        %595 = vmatprep.mubr.bf16.mxu0 0
        %596 = vmatmul.mubr.bf16.gmra.mrb[0].mxu0 %v558
        %v597 = vpop.f32.mrb[0].mxu0
        %v598 = vadd.f32 0.0, %v597
        %v599 = vpop.f32.mrb[0].mxu0
        %v600 = vpop.f32.mrb[0].mxu0
        %v601 = vadd.f32 0.0, %v600
        %v602 = vpop.f32.mrb[0].mxu0
        %603 = vdwg.mxu0
        %v604 = vsel %vm483, %v598, -inf
        %605 = vmax.xlane.f32.xlu0 %v604
        %v606 = vpop.xlane.xlu0 %605
        %v607 = vsel %vm483, %v601, -inf
        %608 = vmax.xlane.f32.xlu0 %v607
        %v609 = vpop.xlane.xlu0 %608
        %v610 = vsub.f32 %v598, %v606
        %v611 = vsub.f32 %v601, %v609
        %v612 = vmul.f32 %v610, 1.442695
        %v613 = vpow.pop %v612
        %v614 = vmul.f32 %v611, 1.442695
        %v615 = vpow.pop %v614
        %v616 = vsel %vm483, %v613, 0.0
        %617 = vadd.xlane.f32.xlu0 %v616
        %v618 = vpop.xlane.xlu0 %617
        %v619 = vsel %vm483, %v615, 0.0
        %620 = vadd.xlane.f32.xlu0 %v619
        %v621 = vpop.xlane.xlu0 %620
        %v622 = vrcp.pop %v618
        %v623 = vrcp.pop %v621
        %v624 = vmul.f32 %v613, %v622
        %v625 = vmul.f32 %v615, %v623
        %v626 = vpack.c.bf16 %v625, %v624
        %628 = vrot.lane.b32.xlu0 %v433, 96
        %v629 = vpop.permute.xlu0 %628
        %v632 = vsel %vm483, %v626, 0
        %634 = vmatprep.subr.bf16.mxu0 0
        %635 = vmatpush1.bf16.msra.mxu0 %v629
        %636 = vmatprep.subr.bf16.mxu0 0
        %637 = vmatpush1.bf16.msra.mxu0 0
        %638 = vmatprep.subr.bf16.mxu0 0
        %639 = vmatpush1.bf16.msra.mxu0 0
        %640 = vmatprep.subr.bf16.mxu0 0
        %641 = vmatpush1.bf16.msra.mxu0 0
        %642 = vmatprep.subr.bf16.mxu0 0
        %643 = vmatpush1.bf16.msra.mxu0 0
        %644 = vmatprep.subr.bf16.mxu0 0
        %645 = vmatpush1.bf16.msra.mxu0 0
        %646 = vmatprep.subr.bf16.mxu0 0
        %647 = vmatpush1.bf16.msra.mxu0 0
        %648 = vmatprep.subr.bf16.mxu0 0
        %649 = vmatpush1.bf16.msra.mxu0 0
        %650 = vmatprep.subr.bf16.mxu0 0
        %651 = vmatpush1.bf16.msra.mxu0 0
        %652 = vmatprep.subr.bf16.mxu0 0
        %653 = vmatpush1.bf16.msra.mxu0 0
        %654 = vmatprep.subr.bf16.mxu0 0
        %655 = vmatpush1.bf16.msra.mxu0 0
        %656 = vmatprep.subr.bf16.mxu0 0
        %657 = vmatpush1.bf16.msra.mxu0 0
        %658 = vmatprep.subr.bf16.mxu0 0
        %659 = vmatpush1.bf16.msra.mxu0 0
        %660 = vmatprep.subr.bf16.mxu0 0
        %661 = vmatpush1.bf16.msra.mxu0 0
        %662 = vmatprep.subr.bf16.mxu0 0
        %663 = vmatpush1.bf16.msra.mxu0 0
        %664 = vmatprep.subr.bf16.mxu0 0
        %665 = vmatpush1.bf16.msra.mxu0 0
        %666 = vmatprep.mubr.bf16.mxu0 0
        %667 = vmatmul.mubr.bf16.gmra.mrb[0].mxu0 %v632
        %v668 = vpop.f32.mrb[0].mxu0
        %v669 = vadd.f32 0.0, %v668
        %v670 = vpop.f32.mrb[0].mxu0
        %v671 = vpop.f32.mrb[0].mxu0
        %v672 = vadd.f32 0.0, %v671
        %v673 = vpop.f32.mrb[0].mxu0
        %674 = vdwg.mxu0
        %675 = vrot.lane.b32.xlu0 %v432, 64
        %v676 = vpop.permute.xlu0 %675
        %677 = vrot.lane.b32.xlu0 %v434, 64
        %v678 = vpop.permute.xlu0 %677
        %v680 = vsel %vm435, %v676, 0
        %v683 = vsel %vm435, %v678, 0
        %685 = vmatprep.subr.bf16.mxu0 0
        %686 = vmatpush1.bf16.xpose.msra.mxu0 %v683
        %687 = vmatprep.subr.bf16.mxu0 0
        %688 = vmatpush1.bf16.xpose.msra.mxu0 0
        %689 = vmatprep.subr.bf16.mxu0 0
        %690 = vmatpush1.bf16.xpose.msra.mxu0 0
        %691 = vmatprep.subr.bf16.mxu0 0
        %692 = vmatpush1.bf16.xpose.msra.mxu0 0
        %693 = vmatprep.subr.bf16.mxu0 0
        %694 = vmatpush1.bf16.xpose.msra.mxu0 0
        %695 = vmatprep.subr.bf16.mxu0 0
        %696 = vmatpush1.bf16.xpose.msra.mxu0 0
        %697 = vmatprep.subr.bf16.mxu0 0
        %698 = vmatpush1.bf16.xpose.msra.mxu0 0
        %699 = vmatprep.subr.bf16.mxu0 0
        %700 = vmatpush1.bf16.xpose.msra.mxu0 0
        %701 = vmatprep.subr.bf16.mxu0 0
        %702 = vmatpush1.bf16.xpose.msra.mxu0 0
        %703 = vmatprep.subr.bf16.mxu0 0
        %704 = vmatpush1.bf16.xpose.msra.mxu0 0
        %705 = vmatprep.subr.bf16.mxu0 0
        %706 = vmatpush1.bf16.xpose.msra.mxu0 0
        %707 = vmatprep.subr.bf16.mxu0 0
        %708 = vmatpush1.bf16.xpose.msra.mxu0 0
        %709 = vmatprep.subr.bf16.mxu0 0
        %710 = vmatpush1.bf16.xpose.msra.mxu0 0
        %711 = vmatprep.subr.bf16.mxu0 0
        %712 = vmatpush1.bf16.xpose.msra.mxu0 0
        %713 = vmatprep.subr.bf16.mxu0 0
        %714 = vmatpush1.bf16.xpose.msra.mxu0 0
        %715 = vmatprep.subr.bf16.mxu0 0
        %716 = vmatpush1.bf16.xpose.msra.mxu0 0
        %717 = vmatprep.mubr.bf16.mxu0 0
        %718 = vmatmul.mubr.bf16.gmra.mrb[0].mxu0 %v680
        %v719 = vpop.f32.mrb[0].mxu0
        %v720 = vadd.f32 0.0, %v719
        %v721 = vpop.f32.mrb[0].mxu0
        %v722 = vpop.f32.mrb[0].mxu0
        %v723 = vadd.f32 0.0, %v722
        %v724 = vpop.f32.mrb[0].mxu0
        %725 = vdwg.mxu0
        %v726 = vsel %vm483, %v720, -inf
        %727 = vmax.xlane.f32.xlu0 %v726
        %v728 = vpop.xlane.xlu0 %727
        %v729 = vsel %vm483, %v723, -inf
        %730 = vmax.xlane.f32.xlu0 %v729
        %v731 = vpop.xlane.xlu0 %730
        %v732 = vsub.f32 %v720, %v728
        %v733 = vsub.f32 %v723, %v731
        %v734 = vmul.f32 %v732, 1.442695
        %v735 = vpow.pop %v734
        %v736 = vmul.f32 %v733, 1.442695
        %v737 = vpow.pop %v736
        %v738 = vsel %vm483, %v735, 0.0
        %739 = vadd.xlane.f32.xlu0 %v738
        %v740 = vpop.xlane.xlu0 %739
        %v741 = vsel %vm483, %v737, 0.0
        %742 = vadd.xlane.f32.xlu0 %v741
        %v743 = vpop.xlane.xlu0 %742
        %v744 = vrcp.pop %v740
        %v745 = vrcp.pop %v743
        %v746 = vmul.f32 %v735, %v744
        %v747 = vmul.f32 %v737, %v745
        %v748 = vpack.c.bf16 %v747, %v746
        %749 = vrot.lane.b32.xlu0 %v433, 64
        %v750 = vpop.permute.xlu0 %749
        %v753 = vsel %vm483, %v748, 0
        %755 = vmatprep.subr.bf16.mxu0 0
        %756 = vmatpush1.bf16.msra.mxu0 %v750
        %757 = vmatprep.subr.bf16.mxu0 0
        %758 = vmatpush1.bf16.msra.mxu0 0
        %759 = vmatprep.subr.bf16.mxu0 0
        %760 = vmatpush1.bf16.msra.mxu0 0
        %761 = vmatprep.subr.bf16.mxu0 0
        %762 = vmatpush1.bf16.msra.mxu0 0
        %763 = vmatprep.subr.bf16.mxu0 0
        %764 = vmatpush1.bf16.msra.mxu0 0
        %765 = vmatprep.subr.bf16.mxu0 0
        %766 = vmatpush1.bf16.msra.mxu0 0
        %767 = vmatprep.subr.bf16.mxu0 0
        %768 = vmatpush1.bf16.msra.mxu0 0
        %769 = vmatprep.subr.bf16.mxu0 0
        %770 = vmatpush1.bf16.msra.mxu0 0
        %771 = vmatprep.subr.bf16.mxu0 0
        %772 = vmatpush1.bf16.msra.mxu0 0
        %773 = vmatprep.subr.bf16.mxu0 0
        %774 = vmatpush1.bf16.msra.mxu0 0
        %775 = vmatprep.subr.bf16.mxu0 0
        %776 = vmatpush1.bf16.msra.mxu0 0
        %777 = vmatprep.subr.bf16.mxu0 0
        %778 = vmatpush1.bf16.msra.mxu0 0
        %779 = vmatprep.subr.bf16.mxu0 0
        %780 = vmatpush1.bf16.msra.mxu0 0
        %781 = vmatprep.subr.bf16.mxu0 0
        %782 = vmatpush1.bf16.msra.mxu0 0
        %783 = vmatprep.subr.bf16.mxu0 0
        %784 = vmatpush1.bf16.msra.mxu0 0
        %785 = vmatprep.subr.bf16.mxu0 0
        %786 = vmatpush1.bf16.msra.mxu0 0
        %787 = vmatprep.mubr.bf16.mxu0 0
        %788 = vmatmul.mubr.bf16.gmra.mrb[0].mxu0 %v753
        %v789 = vpop.f32.mrb[0].mxu0
        %v790 = vadd.f32 0.0, %v789
        %v791 = vpop.f32.mrb[0].mxu0
        %v792 = vpop.f32.mrb[0].mxu0
        %v793 = vadd.f32 0.0, %v792
        %v794 = vpop.f32.mrb[0].mxu0
        %795 = vdwg.mxu0
        %796 = vrot.lane.b32.xlu0 %v432, 32
        %v797 = vpop.permute.xlu0 %796
        %798 = vrot.lane.b32.xlu0 %v434, 32
        %v799 = vpop.permute.xlu0 %798
        %v801 = vsel %vm435, %v797, 0
        %v804 = vsel %vm435, %v799, 0
        %806 = vmatprep.subr.bf16.mxu0 0
        %807 = vmatpush1.bf16.xpose.msra.mxu0 %v804
        %808 = vmatprep.subr.bf16.mxu0 0
        %809 = vmatpush1.bf16.xpose.msra.mxu0 0
        %810 = vmatprep.subr.bf16.mxu0 0
        %811 = vmatpush1.bf16.xpose.msra.mxu0 0
        %812 = vmatprep.subr.bf16.mxu0 0
        %813 = vmatpush1.bf16.xpose.msra.mxu0 0
        %814 = vmatprep.subr.bf16.mxu0 0
        %815 = vmatpush1.bf16.xpose.msra.mxu0 0
        %816 = vmatprep.subr.bf16.mxu0 0
        %817 = vmatpush1.bf16.xpose.msra.mxu0 0
        %818 = vmatprep.subr.bf16.mxu0 0
        %819 = vmatpush1.bf16.xpose.msra.mxu0 0
        %820 = vmatprep.subr.bf16.mxu0 0
        %821 = vmatpush1.bf16.xpose.msra.mxu0 0
        %822 = vmatprep.subr.bf16.mxu0 0
        %823 = vmatpush1.bf16.xpose.msra.mxu0 0
        %824 = vmatprep.subr.bf16.mxu0 0
        %825 = vmatpush1.bf16.xpose.msra.mxu0 0
        %826 = vmatprep.subr.bf16.mxu0 0
        %827 = vmatpush1.bf16.xpose.msra.mxu0 0
        %828 = vmatprep.subr.bf16.mxu0 0
        %829 = vmatpush1.bf16.xpose.msra.mxu0 0
        %830 = vmatprep.subr.bf16.mxu0 0
        %831 = vmatpush1.bf16.xpose.msra.mxu0 0
        %832 = vmatprep.subr.bf16.mxu0 0
        %833 = vmatpush1.bf16.xpose.msra.mxu0 0
        %834 = vmatprep.subr.bf16.mxu0 0
        %835 = vmatpush1.bf16.xpose.msra.mxu0 0
        %836 = vmatprep.subr.bf16.mxu0 0
        %837 = vmatpush1.bf16.xpose.msra.mxu0 0
        %838 = vmatprep.mubr.bf16.mxu0 0
        %839 = vmatmul.mubr.bf16.gmra.mrb[0].mxu0 %v801
        %v840 = vpop.f32.mrb[0].mxu0
        %v841 = vadd.f32 0.0, %v840
        %v842 = vpop.f32.mrb[0].mxu0
        %v843 = vpop.f32.mrb[0].mxu0
        %v844 = vadd.f32 0.0, %v843
        %v845 = vpop.f32.mrb[0].mxu0
        %846 = vdwg.mxu0
        %v847 = vsel %vm483, %v841, -inf
        %848 = vmax.xlane.f32.xlu0 %v847
        %v849 = vpop.xlane.xlu0 %848
        %v850 = vsel %vm483, %v844, -inf
        %851 = vmax.xlane.f32.xlu0 %v850
        %v852 = vpop.xlane.xlu0 %851
        %v853 = vsub.f32 %v841, %v849
        %v854 = vsub.f32 %v844, %v852
        %v855 = vmul.f32 %v853, 1.442695
        %v856 = vpow.pop %v855
        %v857 = vmul.f32 %v854, 1.442695
        %v858 = vpow.pop %v857
        %v859 = vsel %vm483, %v856, 0.0
        %860 = vadd.xlane.f32.xlu0 %v859
        %v861 = vpop.xlane.xlu0 %860
        %v862 = vsel %vm483, %v858, 0.0
        %863 = vadd.xlane.f32.xlu0 %v862
        %v864 = vpop.xlane.xlu0 %863
        %v865 = vrcp.pop %v861
        %v866 = vrcp.pop %v864
        %v867 = vmul.f32 %v856, %v865
        %v868 = vmul.f32 %v858, %v866
        %v869 = vpack.c.bf16 %v868, %v867
        %870 = vrot.lane.b32.xlu0 %v433, 32
        %v871 = vpop.permute.xlu0 %870
        %v874 = vsel %vm483, %v869, 0
        %876 = vmatprep.subr.bf16.mxu0 0
        %877 = vmatpush1.bf16.msra.mxu0 %v871
        %878 = vmatprep.subr.bf16.mxu0 0
        %879 = vmatpush1.bf16.msra.mxu0 0
        %880 = vmatprep.subr.bf16.mxu0 0
        %881 = vmatpush1.bf16.msra.mxu0 0
        %882 = vmatprep.subr.bf16.mxu0 0
        %883 = vmatpush1.bf16.msra.mxu0 0
        %884 = vmatprep.subr.bf16.mxu0 0
        %885 = vmatpush1.bf16.msra.mxu0 0
        %886 = vmatprep.subr.bf16.mxu0 0
        %887 = vmatpush1.bf16.msra.mxu0 0
        %888 = vmatprep.subr.bf16.mxu0 0
        %889 = vmatpush1.bf16.msra.mxu0 0
        %890 = vmatprep.subr.bf16.mxu0 0
        %891 = vmatpush1.bf16.msra.mxu0 0
        %892 = vmatprep.subr.bf16.mxu0 0
        %893 = vmatpush1.bf16.msra.mxu0 0
        %894 = vmatprep.subr.bf16.mxu0 0
        %895 = vmatpush1.bf16.msra.mxu0 0
        %896 = vmatprep.subr.bf16.mxu0 0
        %897 = vmatpush1.bf16.msra.mxu0 0
        %898 = vmatprep.subr.bf16.mxu0 0
        %899 = vmatpush1.bf16.msra.mxu0 0
        %900 = vmatprep.subr.bf16.mxu0 0
        %901 = vmatpush1.bf16.msra.mxu0 0
        %902 = vmatprep.subr.bf16.mxu0 0
        %903 = vmatpush1.bf16.msra.mxu0 0
        %904 = vmatprep.subr.bf16.mxu0 0
        %905 = vmatpush1.bf16.msra.mxu0 0
        %906 = vmatprep.subr.bf16.mxu0 0
        %907 = vmatpush1.bf16.msra.mxu0 0
        %908 = vmatprep.mubr.bf16.mxu0 0
        %909 = vmatmul.mubr.bf16.gmra.mrb[0].mxu0 %v874
        %v910 = vpop.f32.mrb[0].mxu0
        %v911 = vadd.f32 0.0, %v910
        %v912 = vpop.f32.mrb[0].mxu0
        %v913 = vpop.f32.mrb[0].mxu0
        %v914 = vadd.f32 0.0, %v913
        %v915 = vpop.f32.mrb[0].mxu0
        %916 = vdwg.mxu0
        %919 = vrot.lane.b32.xlu0 %v669, 32
        %v920 = vpop.permute.xlu0 %919
        %921 = vrot.lane.b32.xlu0 %v672, 32
        %v922 = vpop.permute.xlu0 %921
        %927 = vrot.lane.b32.xlu0 %v790, 64
        %v928 = vpop.permute.xlu0 %927
        %929 = vrot.lane.b32.xlu0 %v793, 64
        %v930 = vpop.permute.xlu0 %929
        %935 = vrot.lane.b32.xlu0 %v911, 96
        %v936 = vpop.permute.xlu0 %935
        %937 = vrot.lane.b32.xlu0 %v914, 96
        %v938 = vpop.permute.xlu0 %937
        %v941 = vsel %vm435, %v545, %v920
        %v942 = vsel %vm435, %v548, %v922
        %v943 = vsel %vm272, %v941, %v928
        %v944 = vsel %vm272, %v942, %v930
        %vm945 = vcmask 785408
        %v946 = vsel %vm945, %v943, %v936
        %v947 = vsel %vm945, %v944, %v938
        %v948 = vpack.c.bf16 %v947, %v946
        %v949 = vld [vmem:[%s2] sm:$0xff]
        %v950 = vld [vmem:[%s2 + $0x8] sm:$0xff]
        %v951 = vld [vmem:[%s2 + $0x10] sm:$0xff]
        %v952 = vld [vmem:[%s2 + $0x18] sm:$0xff]
        %v953 = vld [vmem:[%s2 + $0x20] sm:$0xff]
        %v954 = vld [vmem:[%s2 + $0x28] sm:$0xff]
        %v955 = vld [vmem:[%s2 + $0x30] sm:$0xff]
        %v956 = vld [vmem:[%s2 + $0x38] sm:$0xff]
        %v957 = vpack.c.bf16 %v950, %v949
        %v958 = vpack.c.bf16 %v952, %v951
        %v959 = vpack.c.bf16 %v954, %v953
        %v960 = vpack.c.bf16 %v956, %v955
        %v961 = vld [vmem:[%s3] sm:$0x1]
        %v963 = vlaneseq
        %v964 = vshrl.u32 %v963, 7
        %v965 = vsub.s32 0, %v964
        %v966 = vrot.slane %v961, %v965
        %968 = vmatprep.subr.bf16.mxu0 0
        %969 = vmatpush1.bf16.xpose.msra.mxu0 %v957
        %970 = vmatprep.subr.bf16.mxu0 0
        %971 = vmatpush1.bf16.xpose.msra.mxu0 %v958
        %972 = vmatprep.subr.bf16.mxu0 0
        %973 = vmatpush1.bf16.xpose.msra.mxu0 %v959
        %974 = vmatprep.subr.bf16.mxu0 0
        %975 = vmatpush1.bf16.xpose.msra.mxu0 %v960
        %976 = vmatprep.subr.bf16.mxu0 0
        %977 = vmatpush1.bf16.xpose.msra.mxu0 0
        %978 = vmatprep.subr.bf16.mxu0 0
        %979 = vmatpush1.bf16.xpose.msra.mxu0 0
        %980 = vmatprep.subr.bf16.mxu0 0
        %981 = vmatpush1.bf16.xpose.msra.mxu0 0
        %982 = vmatprep.subr.bf16.mxu0 0
        %983 = vmatpush1.bf16.xpose.msra.mxu0 0
        %984 = vmatprep.subr.bf16.mxu0 0
        %985 = vmatpush1.bf16.xpose.msra.mxu0 0
        %986 = vmatprep.subr.bf16.mxu0 0
        %987 = vmatpush1.bf16.xpose.msra.mxu0 0
        %988 = vmatprep.subr.bf16.mxu0 0
        %989 = vmatpush1.bf16.xpose.msra.mxu0 0
        %990 = vmatprep.subr.bf16.mxu0 0
        %991 = vmatpush1.bf16.xpose.msra.mxu0 0
        %992 = vmatprep.subr.bf16.mxu0 0
        %993 = vmatpush1.bf16.xpose.msra.mxu0 0
        %994 = vmatprep.subr.bf16.mxu0 0
        %995 = vmatpush1.bf16.xpose.msra.mxu0 0
        %996 = vmatprep.subr.bf16.mxu0 0
        %997 = vmatpush1.bf16.xpose.msra.mxu0 0
        %998 = vmatprep.subr.bf16.mxu0 0
        %999 = vmatpush1.bf16.xpose.msra.mxu0 0
        %1000 = vmatprep.mubr.bf16.mxu0 0
        %1001 = vmatmul.mubr.bf16.gmra.mrb[0].mxu0 %v948
        %v1002 = vpop.f32.mrb[0].mxu0
        %v1003 = vadd.f32 %v966, %v1002
        %v1004 = vpop.f32.mrb[0].mxu0
        %v1005 = vpop.f32.mrb[0].mxu0
        %v1006 = vadd.f32 %v966, %v1005
        %v1007 = vpop.f32.mrb[0].mxu0
        %1008 = vdwg.mxu0
        %1009 = vst.msk [vmem:[%s190] sm:$0xff] %vm272, %v1003
        %1010 = vst.msk [vmem:[%s190 + $0x8] sm:$0xff] %vm272, %v1006
        %s1011 = sand.u32 %s115, 1
        %s1012 = scalar_lea.sflag [#allocation3], %s1011
        %s1013 = sand.u32 %s115, 1
        %s1014 = smul.addr %s1013, 16
        %s1015 = scalar_lea.vmem [#allocation2], %s1014
        // Predicated region
        $region37: #{attention_forward.1} parent=35 // pred_check
          %p1016 = pneg %p125
        $region38: #{attention_forward.1} parent=35 // pred_check_branch
          %1018 = sbr.rel (%p1016) target = $region40
        $region39: #{attention_forward.1} parent=35 // pred_region
          %s1020 = ssub.s32 256, 256
          %1021 = vsyncadd %s1012, %s1020
          %s1022 = smul.addr %s18, 2
          %s1023 = smul.addr %s1022, 128
          %s1024 = scalar_lea.hbm %s4, %s1023
          %s1025 = sshll.u32 %s1015, 4
          %s1026 = int_to_ptr.vmem [resolvable:$true] %s1025
          %1031 = dma.vmem_to_hbm [thread:$0]  %s1026, 256, %s1024, %s1012, 128, 128, 8
        $region40: #{attention_forward.1} parent=35 // pred_fallthru
          _
      $region36: #{attention_forward.1} parent=5 // pred_fallthru
        _
      %p1032 = scmp.le.s32.totalorder 2, %s13
      // Predicated region
      $region41: #{attention_forward.1} parent=5 // pred_check
        %p1033 = pneg %p1032
      $region42: #{attention_forward.1} parent=5 // pred_check_branch
        %1035 = sbr.rel (%p1033) target = $region44
      $region43: #{attention_forward.1} parent=5 // pred_region
        %s1036 = ssub.s32 %s13, 2
        // Predicated region
        $region45: #{attention_forward.1} parent=43 // pred_check
          %p1037 = pneg %p131
        $region46: #{attention_forward.1} parent=43 // pred_check_branch
          %1039 = sbr.rel (%p1037) target = $region48
        $region47: #{attention_forward.1} parent=43 // pred_region
          %s1040 = sand.u32 %s116, 1
          %s1041 = scalar_lea.sflag [#allocation3], %s1040
          %s1042 = sand.u32 %s116, 1
          %s1043 = smul.addr %s1042, 16
          %s1044 = scalar_lea.vmem [#allocation2], %s1043
          %1045 = dma.done %s1041, 256
        $region48: #{attention_forward.1} parent=43 // pred_fallthru
          _
      $region44: #{attention_forward.1} parent=5 // pred_fallthru
        _
    $region6: #{attention_forward.1} parent=1 // loop_footer
      %s17 = sadd.s32 1, %s13
    $region7: #{attention_forward.1} parent=1 // loop_footer_branch
      %12 = sbr.rel target = $region3
    $region8: #{attention_forward.1} parent=1 // loop_exit
      _
    %1046 = vsyncpa [#allocation3], 1
    %s1047 = scalar_lea.sflag [#allocation3], 1
    %1048 = vsyncpa %s1047, 1

</llo_original>
